<compile_context>
chip_gen: v6e
topology: v6e:2x2x1
jax: 0.10.0
libtpu: 0.0.40
codegen_flags: <defaults>
</compile_context>

<pallas_src>
import functools
from collections import OrderedDict

import jax
import jax.numpy as jnp
from jax.experimental import pallas as pl
from jax.experimental.pallas import tpu as pltpu


# torchvision vgg16().features module list (indices 0..30).
VGG16_FEATURES = (
    ("conv", 3, 64), ("relu",), ("conv", 64, 64), ("relu",), ("pool",),
    ("conv", 64, 128), ("relu",), ("conv", 128, 128), ("relu",), ("pool",),
    ("conv", 128, 256), ("relu",), ("conv", 256, 256), ("relu",),
    ("conv", 256, 256), ("relu",), ("pool",),
    ("conv", 256, 512), ("relu",), ("conv", 512, 512), ("relu",),
    ("conv", 512, 512), ("relu",), ("pool",),
    ("conv", 512, 512), ("relu",), ("conv", 512, 512), ("relu",),
    ("conv", 512, 512), ("relu",), ("pool",),
)

_VMEM_LIMIT_BYTES = 48 * 1024 * 1024  # <= 64 MiB physical VMEM on v7x
_LANE = 128


def _round_up(v, m):
    return ((v + m - 1) // m) * m


def _cparams(n_axes):
    return pltpu.CompilerParams(
        dimension_semantics=("parallel",) * n_axes,
        vmem_limit_bytes=_VMEM_LIMIT_BYTES,
    )


# ---------------------------------------------------------------------------
# Fused conv3x3 (stride 1, pad 1) + bias + ReLU
# ---------------------------------------------------------------------------
def _conv_relu_kernel(xs_ref, w_ref, b_ref, o_ref, *, width):
    # xs_ref: ((H+2)*W, 3*Cin) bf16 -- padded rows, 3-wide W window in channels
    # w_ref : (3, 3*Cin, TCout)   bf16 -- one (3*Cin, TCout) matrix per kh tap
    # b_ref : (1, TCout)          f32
    # o_ref : (H*W, TCout)        f32
    m = o_ref.shape[0]  # H*W output rows
    acc = jnp.dot(xs_ref[0:m, :], w_ref[0], preferred_element_type=jnp.float32)
    acc = acc + jnp.dot(xs_ref[width:width + m, :], w_ref[1],
                        preferred_element_type=jnp.float32)
    acc = acc + jnp.dot(xs_ref[2 * width:2 * width + m, :], w_ref[2],
                        preferred_element_type=jnp.float32)
    # bias + ReLU epilogue, applied exactly once (fused -> no extra HBM pass).
    o_ref[...] = jnp.maximum(acc + b_ref[...], 0.0).astype(o_ref.dtype)


def conv3x3_relu(x, w3, b2, *, tile_cout=_LANE):
    """x: (N,H,W,Cin) f32; w3: (3, 3*Cin, Cout_p) bf16; b2: (1, Cout_p) f32."""
    N, H, W, Cin = x.shape
    assert w3.shape[0] == 3 and w3.shape[1] == 3 * Cin
    cout_p = w3.shape[2]
    tc = min(tile_cout, cout_p)
    assert cout_p % tc == 0

    # Wrapper glue: bf16 cast + spatial zero-pad + 3-wide window along W only.
    xb = x.astype(jnp.bfloat16)
    xp = jnp.pad(xb, ((0, 0), (1, 1), (1, 1), (0, 0)))
    xs = jnp.concatenate(
        [xp[:, :, 0:W, :], xp[:, :, 1:W + 1, :], xp[:, :, 2:W + 2, :]], axis=-1
    )  # (N, H+2, W, 3*Cin)
    xs = xs.reshape(N, (H + 2) * W, 3 * Cin)  # free row-major reshape

    out = pl.pallas_call(
        functools.partial(_conv_relu_kernel, width=W),
        out_shape=jax.ShapeDtypeStruct((N, H * W, cout_p), jnp.float32),
        grid=(N, cout_p // tc),
        in_specs=[
            # constant block index over the inner Cout axis -> DMA'd once per n
            pl.BlockSpec((None, (H + 2) * W, 3 * Cin), lambda n, j: (n, 0, 0)),
            pl.BlockSpec((3, 3 * Cin, tc), lambda n, j: (0, 0, j)),
            pl.BlockSpec((1, tc), lambda n, j: (0, j)),
        ],
        out_specs=pl.BlockSpec((None, H * W, tc), lambda n, j: (n, 0, j)),
        compiler_params=_cparams(2),
    )(xs, w3, b2)
    return out.reshape(N, H, W, cout_p)


# ---------------------------------------------------------------------------
# MaxPool 2x2 stride 2 -- reads the activation directly, no stacked copy.
# ---------------------------------------------------------------------------
def _maxpool_kernel(v_ref, o_ref):
    # v_ref: (TR, 2, Wo, 2*C) -- row parity is a major dim, W parity is the
    # two 128-aligned halves of the lane dim.
    v = v_ref[...]
    a = jnp.maximum(v[:, 0], v[:, 1])        # reduce over row parity (major dim)
    c = o_ref.shape[-1]
    o_ref[...] = jnp.maximum(a[..., :c], a[..., c:])  # reduce over W parity


def maxpool2x2(x):
    N, H, W, C = x.shape
    Ho, Wo = H // 2, W // 2
    v = x.reshape(N, Ho, 2, Wo, 2 * C)  # free row-major reshape (no HBM copy)
    tr = next(d for d in (8, 4, 2, 1) if Ho % d == 0)
    return pl.pallas_call(
        _maxpool_kernel,
        out_shape=jax.ShapeDtypeStruct((N, Ho, Wo, C), x.dtype),
        grid=(N, Ho // tr),
        in_specs=[pl.BlockSpec((None, tr, 2, Wo, 2 * C),
                               lambda n, r: (n, r, 0, 0, 0))],
        out_specs=pl.BlockSpec((None, tr, Wo, C), lambda n, r: (n, r, 0, 0)),
        compiler_params=_cparams(2),
    )(v)


# ---------------------------------------------------------------------------
# Parameters (deterministic synthetic init) + packing into kernel layout
# ---------------------------------------------------------------------------
def init_vgg16_params(key):
    params = []
    for layer in VGG16_FEATURES:
        if layer[0] != "conv":
            continue
        _, cin, cout = layer
        key, kw_, kb_ = jax.random.split(key, 3)
        w = jax.random.normal(kw_, (3, 3, cin, cout), jnp.float32) * jnp.sqrt(
            2.0 / (9.0 * cin))
        b = jax.random.normal(kb_, (cout,), jnp.float32) * 0.01
        params.append((w, b))
    return params


def pack_conv_params(w_hwio, b):
    """(3,3,Cin,Cout) f32 -> (3, 3*Cin_p, Cout_p) bf16 and (1, Cout_p) f32."""
    _, _, cin, cout = w_hwio.shape
    cin_p = cin if cin == 3 else _round_up(cin, _LANE)
    cout_p = _round_up(cout, _LANE)
    w = jnp.pad(w_hwio, ((0, 0), (0, 0), (0, cin_p - cin), (0, cout_p - cout)))
    w3 = w.reshape(3, 3 * cin_p, cout_p).astype(jnp.bfloat16)
    b2 = jnp.pad(b, (0, cout_p - cout)).reshape(1, cout_p).astype(jnp.float32)
    return w3, b2


def pack_vgg16_params(raw):
    return [pack_conv_params(w, b) for (w, b) in raw]


# ---------------------------------------------------------------------------
# NewModel.forward equivalent: run the feature stack, capture hooked outputs.
# ---------------------------------------------------------------------------
def new_model_forward(x_nchw, packed_params, output_layers):
    x = jnp.transpose(x_nchw, (0, 2, 3, 1)).astype(jnp.float32)  # NCHW -> NHWC
    selected = OrderedDict()

    def capture(idx, act, logical_c):
        a = act[..., :logical_c] if act.shape[-1] != logical_c else act
        selected[str(idx)] = jnp.transpose(a, (0, 3, 1, 2))  # back to NCHW

    i, ci, cur_c = 0, 0, 3
    while i < len(VGG16_FEATURES):
        layer = VGG16_FEATURES[i]
        if layer[0] == "conv":
            assert VGG16_FEATURES[i + 1][0] == "relu"
            w3, b2 = packed_params[ci]
            ci += 1
            cur_c = layer[2]
            x = conv3x3_relu(x, w3, b2)  # fused conv+bias+ReLU
            # ReLU(inplace=True) aliases the conv output in torch, so hooks on
            # the conv index and on the relu index both see post-ReLU values.
            if i in output_layers:
                capture(i, x, cur_c)
            if (i + 1) in output_layers:
                capture(i + 1, x, cur_c)
            i += 2
        else:  # maxpool
            x = maxpool2x2(x)
            if i in output_layers:
                capture(i, x, cur_c)
            i += 1
    return selected


if __name__ == "__main__":
    key = jax.random.PRNGKey(0)
    kx, kp, k1, k2, k3 = jax.random.split(key, 5)

    # ---- unit checks against XLA references (same bf16-rounded operands) ----
    def conv_ref(x, w, b):
        xb = x.astype(jnp.bfloat16).astype(jnp.float32)
        wb = w.astype(jnp.bfloat16).astype(jnp.float32)
        y = jax.lax.conv_general_dilated(
            xb, wb, (1, 1), "SAME",
            dimension_numbers=("NHWC", "HWIO", "NHWC"),
            precision=jax.lax.Precision.HIGHEST)
        return jnp.maximum(y + b, 0.0)

    for (cin, cout, hw), kk in (((3, 64, 16), k1), ((128, 256, 8), k2)):
        ka, kb_, kc = jax.random.split(kk, 3)
        xt = jax.random.normal(ka, (2, hw, hw, cin), jnp.float32)
        wt = jax.random.normal(kb_, (3, 3, cin, cout), jnp.float32) * 0.1
        bt = jax.random.normal(kc, (cout,), jnp.float32) * 0.1
        w3, b2 = pack_conv_params(wt, bt)
        got = jax.jit(conv3x3_relu)(xt, w3, b2)[..., :cout]
        want = conv_ref(xt, wt, bt)
        err = float(jnp.max(jnp.abs(got - want)))
        assert got.shape == want.shape and err < 1e-2, err

    xt = jax.random.normal(k3, (2, 8, 8, 128), jnp.float32)
    got = jax.jit(maxpool2x2)(xt)
    want = jax.lax.reduce_window(xt, -jnp.inf, jax.lax.max,
                                 (1, 2, 2, 1), (1, 2, 2, 1), "VALID")
    assert float(jnp.max(jnp.abs(got - want))) == 0.0

    # ---- full NewModel forward with hooks (classic style-transfer layers) ----
    output_layers = (3, 8, 15, 22)
    x = jax.random.normal(kx, (2, 3, 32, 32), jnp.float32)  # small NCHW input
    packed = pack_vgg16_params(init_vgg16_params(kp))

    fwd = jax.jit(functools.partial(new_model_forward,
                                    output_layers=output_layers))
    out = fwd(x, packed)
    out = jax.tree_util.tree_map(lambda a: a.block_until_ready(), out)

    assert list(out.keys()) == ["3", "8", "15", "22"]
    assert out["3"].shape == (2, 64, 32, 32)
    assert out["8"].shape == (2, 128, 16, 16)
    assert out["15"].shape == (2, 256, 8, 8)
    assert out["22"].shape == (2, 512, 4, 4)

    print("KERNEL_OK")
</pallas_src>

<mosaic_0001>
module attributes {stable_mosaic.version = 11 : i64} {
  func.func @_conv_relu_kernel(%arg0: i32, %arg1: i32, %arg2: memref<1x288x9xbf16, #tpu.memory_space<vmem>>, %arg3: memref<3x9x128xbf16, #tpu.memory_space<vmem>>, %arg4: memref<1x128xf32, #tpu.memory_space<vmem>>, %arg5: memref<1x256x128xf32, #tpu.memory_space<vmem>>) attributes {dimension_semantics = [#tpu.dimension_semantics<parallel>, #tpu.dimension_semantics<parallel>], iteration_bounds = array<i64: 2, 1>, scalar_prefetch = 0 : i64, scratch_operands = 0 : i64, tpu.core_type = #tpu.core_type<tc>, window_params = [{transform_indices = @transform_0, window_bounds = array<i64: 1, 288, 9>}, {transform_indices = @transform_1, window_bounds = array<i64: 3, 9, 128>}, {transform_indices = @transform_2, window_bounds = array<i64: 1, 128>}, {transform_indices = @transform_3, window_bounds = array<i64: 1, 256, 128>}]} {
    %c0 = arith.constant 0 : index
    %c0_0 = arith.constant 0 : index
    %c0_1 = arith.constant 0 : index
    %0 = vector.load %arg2[%c0, %c0_0, %c0_1] : memref<1x288x9xbf16, #tpu.memory_space<vmem>>, vector<1x256x9xbf16>
    %1 = vector.shape_cast %0 : vector<1x256x9xbf16> to vector<256x9xbf16>
    %c0_2 = arith.constant 0 : index
    %c0_3 = arith.constant 0 : index
    %c0_4 = arith.constant 0 : index
    %2 = vector.load %arg3[%c0_2, %c0_3, %c0_4] : memref<3x9x128xbf16, #tpu.memory_space<vmem>>, vector<1x9x128xbf16>
    %3 = vector.shape_cast %2 : vector<1x9x128xbf16> to vector<9x128xbf16>
    %cst = arith.constant dense<0.000000e+00> : vector<256x128xf32>
    %4 = tpu.matmul %1, %3, %cst {dimension_numbers = #tpu.dot_dimension_numbers<[1], [0], [0], [1], [0, 0, 1, 1], [], []>} : vector<256x9xbf16>, vector<9x128xbf16>, vector<256x128xf32> -> vector<256x128xf32>
    %c0_5 = arith.constant 0 : index
    %c16 = arith.constant 16 : index
    %c0_6 = arith.constant 0 : index
    %5 = vector.load %arg2[%c0_5, %c16, %c0_6] : memref<1x288x9xbf16, #tpu.memory_space<vmem>>, vector<1x256x9xbf16>
    %6 = vector.shape_cast %5 : vector<1x256x9xbf16> to vector<256x9xbf16>
    %c1 = arith.constant 1 : index
    %c0_7 = arith.constant 0 : index
    %c0_8 = arith.constant 0 : index
    %7 = vector.load %arg3[%c1, %c0_7, %c0_8] : memref<3x9x128xbf16, #tpu.memory_space<vmem>>, vector<1x9x128xbf16>
    %8 = vector.shape_cast %7 : vector<1x9x128xbf16> to vector<9x128xbf16>
    %cst_9 = arith.constant dense<0.000000e+00> : vector<256x128xf32>
    %9 = tpu.matmul %6, %8, %cst_9 {dimension_numbers = #tpu.dot_dimension_numbers<[1], [0], [0], [1], [0, 0, 1, 1], [], []>} : vector<256x9xbf16>, vector<9x128xbf16>, vector<256x128xf32> -> vector<256x128xf32>
    %10 = arith.addf %4, %9 : vector<256x128xf32>
    %c0_10 = arith.constant 0 : index
    %c32 = arith.constant 32 : index
    %c0_11 = arith.constant 0 : index
    %11 = vector.load %arg2[%c0_10, %c32, %c0_11] : memref<1x288x9xbf16, #tpu.memory_space<vmem>>, vector<1x256x9xbf16>
    %12 = vector.shape_cast %11 : vector<1x256x9xbf16> to vector<256x9xbf16>
    %c2 = arith.constant 2 : index
    %c0_12 = arith.constant 0 : index
    %c0_13 = arith.constant 0 : index
    %13 = vector.load %arg3[%c2, %c0_12, %c0_13] : memref<3x9x128xbf16, #tpu.memory_space<vmem>>, vector<1x9x128xbf16>
    %14 = vector.shape_cast %13 : vector<1x9x128xbf16> to vector<9x128xbf16>
    %cst_14 = arith.constant dense<0.000000e+00> : vector<256x128xf32>
    %15 = tpu.matmul %12, %14, %cst_14 {dimension_numbers = #tpu.dot_dimension_numbers<[1], [0], [0], [1], [0, 0, 1, 1], [], []>} : vector<256x9xbf16>, vector<9x128xbf16>, vector<256x128xf32> -> vector<256x128xf32>
    %16 = arith.addf %10, %15 : vector<256x128xf32>
    %c0_15 = arith.constant 0 : index
    %c0_16 = arith.constant 0 : index
    %17 = vector.load %arg4[%c0_15, %c0_16] : memref<1x128xf32, #tpu.memory_space<vmem>>, vector<1x128xf32>
    %18 = vector.broadcast %17 : vector<1x128xf32> to vector<256x128xf32>
    %19 = arith.addf %16, %18 : vector<256x128xf32>
    %cst_17 = arith.constant 0.000000e+00 : f32
    %20 = vector.broadcast %cst_17 : f32 to vector<256x128xf32>
    %21 = arith.maximumf %19, %20 : vector<256x128xf32>
    %c0_18 = arith.constant 0 : index
    %c0_19 = arith.constant 0 : index
    %c0_20 = arith.constant 0 : index
    %22 = vector.load %arg5[%c0_18, %c0_19, %c0_20] : memref<1x256x128xf32, #tpu.memory_space<vmem>>, vector<1x256x128xf32>
    %23 = vector.shape_cast %22 : vector<1x256x128xf32> to vector<256x128xf32>
    %24 = vector.shape_cast %21 : vector<256x128xf32> to vector<1x256x128xf32>
    tpu.vector_store %arg5[%c0_18, %c0_19, %c0_20], %24 {strides = array<i32>} : memref<1x256x128xf32, #tpu.memory_space<vmem>>, vector<1x256x128xf32>,
    return
  }
  func.func @transform_0(%arg0: i32, %arg1: i32) -> (i32, i32, i32) {
    %c0_i32 = arith.constant 0 : i32
    %c0_i32_0 = arith.constant 0 : i32
    %c0_i32_1 = arith.constant 0 : i32
    return %arg0, %c0_i32, %c0_i32_0 : i32, i32, i32
  }
  func.func @transform_1(%arg0: i32, %arg1: i32) -> (i32, i32, i32) {
    %c0_i32 = arith.constant 0 : i32
    %c0_i32_0 = arith.constant 0 : i32
    %c0_i32_1 = arith.constant 0 : i32
    return %c0_i32, %c0_i32_0, %arg1 : i32, i32, i32
  }
  func.func @transform_2(%arg0: i32, %arg1: i32) -> (i32, i32) {
    %c0_i32 = arith.constant 0 : i32
    %c0_i32_0 = arith.constant 0 : i32
    return %c0_i32, %arg1 : i32, i32
  }
  func.func @transform_3(%arg0: i32, %arg1: i32) -> (i32, i32, i32) {
    %c0_i32 = arith.constant 0 : i32
    %c0_i32_0 = arith.constant 0 : i32
    return %arg0, %c0_i32, %arg1 : i32, i32, i32
  }
}

</mosaic_0001>

<llo_original>
// kernel: conv3x3_relu.1
$region0: #{conv3x3_relu.1}
  #allocation0 [shape = 'u32[]', space=smem, size = 0x4, offset = 0x4, fixed_abs, tag = 'smem constant byte address 0x4 - core index']
  #allocation1 [shape = 'u32[144,128]{1,0:T(1,128)}', space=vmem, size = 0x12000, scoped, tag = 'internal scratch']
  %s0 = inlined_call_operand.vmem [shape: bf16[2,288,9], index: 0, kind: input, shape index: {}]
  %s1 = inlined_call_operand.vmem [shape: bf16[3,9,128], index: 1, kind: input, shape index: {}]
  %s2 = inlined_call_operand.vmem [shape: f32[1,128], index: 2, kind: input, shape index: {}]
  %s3 = inlined_call_operand.hbm [shape: f32[2,256,128], index: 3, kind: output, shape index: {}]
  %s4 = sld [smem:[#allocation0]]
  $region45: #{conv3x3_relu.1} parent=0
    _
  %s6 = ssub.s32 1, %s4
  %s7 = scalar_select 0, %s6, %s4
  $region1: #{conv3x3_relu.1} parent=0
    #allocation2 [shape = 'u8[262144]{0}', space=vmem, size = 0x40000, scoped, tag = 'output window, operand 0']
    #allocation3 [shape = 's32[2]{0}', space=sflag, size = 0x8, scoped, tag = 'scoped memory for conv3x3_relu.1']
    %8 = vsyncpa [#allocation3], 0
    %s9 = scalar_lea.sflag [#allocation3], 1
    %10 = vsyncpa %s9, 0
    loop: start=0, step=1, limit=4
    $region2: #{conv3x3_relu.1} parent=1 // loop_pre_header
      _
    $region3: #{conv3x3_relu.1} parent=1 // loop_header
      %s12 = sphi 0, %s16
      %p13 = scmp.ge.s32.totalorder %s12, 4
      %s19 = sphi 0, %s31
      %s20 = sphi 0, %s27
      %s21 = sphi 0, %s19
      %s22 = sphi 0, %s20
      %s23 = sphi 0, %s21
      %s24 = sphi 0, %s22
      %s34 = sphi 0, %s36
      %s37 = sphi 0, %s34
      %s38 = sphi 0, %s37
      %s54 = sphi 0, %s38
      %s60 = sphi 0, %s62
      %s63 = sphi 0, %s60
      %s64 = sphi 0, %s63
      %s80 = sphi 0, %s64
      %s86 = sphi 0, %s88
      %s89 = sphi 0, %s86
      %s90 = sphi 0, %s89
      %s106 = sphi 0, %s90
      %s114 = sphi 0, %s116
      %s117 = sphi 0, %s114
      %s118 = sphi 0, %s117
      %s134 = sphi 0, %s118
    $region4: #{conv3x3_relu.1} parent=1 // loop_header_branch
      %15 = sbr.rel (%p13) target = $region8
    $region5: #{conv3x3_relu.1} parent=1 // loop_body
      %s17 = ssub.s32 %s12, 1
      %s18 = ssub.s32 %s12, 2
      %s25 = sadd.s32 1, %s20
      %p26 = scmp.ge.s32.totalorder %s25, 1
      %s27 = scalar_select %p26, 0, %s25
      %s28 = sadd.s32 1, %s19
      %s29 = scalar_select %p26, %s28, %s19
      %p30 = scmp.ge.s32.totalorder %s29, 2
      %s31 = scalar_select %p30, 0, %s29
      %s32 = ssub.s32 %s19, %s31
      %p33 = scmp.eq.s32.totalorder %s32, 0
      %s35 = sadd.s32 %s34, 1
      %s36 = scalar_select %p33, %s34, %s35
      %p39 = pneg %p33
      %p40 = scmp.eq.s32.totalorder %s12, 1
      %p41 = por %p39, %p40
      %p42 = scmp.ne.s32.totalorder %s34, %s37
      %p43 = scmp.eq.s32.totalorder %s12, 0
      %p44 = por %p42, %p43
      %p45 = scmp.ne.s32.totalorder %s34, %s37
      %p46 = scmp.eq.s32.totalorder %s17, 1
      %p47 = por %p45, %p46
      %p48 = scmp.ne.s32.totalorder %s37, %s38
      %p49 = scmp.eq.s32.totalorder %s17, 0
      %p50 = por %p48, %p49
      %p51 = scmp.ne.s32.totalorder %s37, %s38
      %p52 = scmp.eq.s32.totalorder %s18, 1
      %p53 = por %p51, %p52
      %p55 = scmp.ne.s32.totalorder %s38, %s54
      %p56 = scmp.eq.s32.totalorder %s18, 0
      %p57 = por %p55, %p56
      %s58 = ssub.s32 %s20, %s27
      %p59 = scmp.eq.s32.totalorder %s58, 0
      %s61 = sadd.s32 %s60, 1
      %s62 = scalar_select %p59, %s60, %s61
      %p65 = pneg %p59
      %p66 = scmp.eq.s32.totalorder %s12, 1
      %p67 = por %p65, %p66
      %p68 = scmp.ne.s32.totalorder %s60, %s63
      %p69 = scmp.eq.s32.totalorder %s12, 0
      %p70 = por %p68, %p69
      %p71 = scmp.ne.s32.totalorder %s60, %s63
      %p72 = scmp.eq.s32.totalorder %s17, 1
      %p73 = por %p71, %p72
      %p74 = scmp.ne.s32.totalorder %s63, %s64
      %p75 = scmp.eq.s32.totalorder %s17, 0
      %p76 = por %p74, %p75
      %p77 = scmp.ne.s32.totalorder %s63, %s64
      %p78 = scmp.eq.s32.totalorder %s18, 1
      %p79 = por %p77, %p78
      %p81 = scmp.ne.s32.totalorder %s64, %s80
      %p82 = scmp.eq.s32.totalorder %s18, 0
      %p83 = por %p81, %p82
      %s84 = ssub.s32 %s20, %s27
      %p85 = scmp.eq.s32.totalorder %s84, 0
      %s87 = sadd.s32 %s86, 1
      %s88 = scalar_select %p85, %s86, %s87
      %p91 = pneg %p85
      %p92 = scmp.eq.s32.totalorder %s12, 1
      %p93 = por %p91, %p92
      %p94 = scmp.ne.s32.totalorder %s86, %s89
      %p95 = scmp.eq.s32.totalorder %s12, 0
      %p96 = por %p94, %p95
      %p97 = scmp.ne.s32.totalorder %s86, %s89
      %p98 = scmp.eq.s32.totalorder %s17, 1
      %p99 = por %p97, %p98
      %p100 = scmp.ne.s32.totalorder %s89, %s90
      %p101 = scmp.eq.s32.totalorder %s17, 0
      %p102 = por %p100, %p101
      %p103 = scmp.ne.s32.totalorder %s89, %s90
      %p104 = scmp.eq.s32.totalorder %s18, 1
      %p105 = por %p103, %p104
      %p107 = scmp.ne.s32.totalorder %s90, %s106
      %p108 = scmp.eq.s32.totalorder %s18, 0
      %p109 = por %p107, %p108
      %s110 = ssub.s32 %s19, %s31
      %s111 = ssub.s32 %s20, %s27
      %s112 = sor.u32 %s110, %s111
      %p113 = scmp.eq.s32.totalorder %s112, 0
      %s115 = sadd.s32 %s114, 1
      %s116 = scalar_select %p113, %s114, %s115
      %p119 = pneg %p113
      %p120 = scmp.eq.s32.totalorder %s12, 1
      %p121 = por %p119, %p120
      %p122 = scmp.ne.s32.totalorder %s114, %s117
      %p123 = scmp.eq.s32.totalorder %s12, 0
      %p124 = por %p122, %p123
      %p125 = scmp.ne.s32.totalorder %s114, %s117
      %p126 = scmp.eq.s32.totalorder %s17, 1
      %p127 = por %p125, %p126
      %p128 = scmp.ne.s32.totalorder %s117, %s118
      %p129 = scmp.eq.s32.totalorder %s17, 0
      %p130 = por %p128, %p129
      %p131 = scmp.ne.s32.totalorder %s117, %s118
      %p132 = scmp.eq.s32.totalorder %s18, 1
      %p133 = por %p131, %p132
      %p135 = scmp.ne.s32.totalorder %s118, %s134
      %p136 = scmp.eq.s32.totalorder %s18, 0
      %p137 = por %p135, %p136
      %p138 = scmp.le.s32.totalorder 1, %s12
      %p139 = scmp.lt.s32.totalorder %s12, 3
      %p140 = pnand %p138, %p139
      %p141 = pneg %p140
      // Predicated region
      $region9: #{conv3x3_relu.1} parent=5 // pred_check
        _
      $region10: #{conv3x3_relu.1} parent=5 // pred_check_branch
        %143 = sbr.rel (%p140) target = $region12
      $region11: #{conv3x3_relu.1} parent=5 // pred_region
        %s144 = ssub.s32 %s12, 1
        // Predicated region
        $region13: #{conv3x3_relu.1} parent=11 // pred_check
          %p145 = pneg %p76
        $region14: #{conv3x3_relu.1} parent=11 // pred_check_branch
          %147 = sbr.rel (%p145) target = $region16
        $region15: #{conv3x3_relu.1} parent=11 // pred_region
          %p148 = scmp.lt.s32.totalorder %s22, 0
          %s149 = scalar_select %p148, %s22, 0
          %s150 = smul.addr %s149, 4
          %s151 = scalar_lea.vmem %s1, %s150
        $region16: #{conv3x3_relu.1} parent=11 // pred_fallthru
          _
        // Predicated region
        $region17: #{conv3x3_relu.1} parent=11 // pred_check
          %p152 = pneg %p102
        $region18: #{conv3x3_relu.1} parent=11 // pred_check_branch
          %154 = sbr.rel (%p152) target = $region20
        $region19: #{conv3x3_relu.1} parent=11 // pred_region
          %p155 = scmp.lt.s32.totalorder %s22, 0
          %s156 = scalar_select %p155, %s22, 0
          %s157 = scalar_lea.vmem %s2, %s156
        $region20: #{conv3x3_relu.1} parent=11 // pred_fallthru
          _
      $region12: #{conv3x3_relu.1} parent=5 // pred_fallthru
        _
      %p158 = scmp.lt.s32.totalorder %s12, 2
      // Predicated region
      $region21: #{conv3x3_relu.1} parent=5 // pred_check
        %p159 = pneg %p158
      $region22: #{conv3x3_relu.1} parent=5 // pred_check_branch
        %161 = sbr.rel (%p159) target = $region24
      $region23: #{conv3x3_relu.1} parent=5 // pred_region
        // Predicated region
        $region25: #{conv3x3_relu.1} parent=23 // pred_check
          %p162 = pneg %p44
        $region26: #{conv3x3_relu.1} parent=23 // pred_check_branch
          %164 = sbr.rel (%p162) target = $region28
        $region27: #{conv3x3_relu.1} parent=23 // pred_region
          %p165 = scmp.lt.s32.totalorder %s19, 1
          %s166 = scalar_select %p165, %s19, 1
          %s167 = smul.addr %s166, 36
          %s168 = smul.addr %s167, 4
          %s169 = scalar_lea.vmem %s0, %s168
        $region28: #{conv3x3_relu.1} parent=23 // pred_fallthru
          _
      $region24: #{conv3x3_relu.1} parent=5 // pred_fallthru
        _
      %p170 = scmp.le.s32.totalorder 1, %s12
      %p171 = scmp.lt.s32.totalorder %s12, 3
      %p172 = pnand %p170, %p171
      %p173 = pneg %p172
      // Predicated region
      $region29: #{conv3x3_relu.1} parent=5 // pred_check
        _
      $region30: #{conv3x3_relu.1} parent=5 // pred_check_branch
        %175 = sbr.rel (%p172) target = $region32
      $region31: #{conv3x3_relu.1} parent=5 // pred_region
        %s176 = ssub.s32 %s12, 1
        %p177 = scmp.lt.s32.totalorder %s21, 1
        %s178 = scalar_select %p177, %s21, 1
        %s179 = smul.addr %s178, 36
        %s180 = smul.addr %s179, 4
        %s181 = scalar_lea.vmem %s0, %s180
        %p182 = pneg %p50
        %p183 = pneg %p47
        %p184 = scmp.lt.s32.totalorder %s22, 0
        %s185 = scalar_select %p184, %s22, 0
        %s186 = smul.addr %s185, 4
        %s187 = scalar_lea.vmem %s1, %s186
        %p188 = pneg %p76
        %p189 = pneg %p73
        %p190 = scmp.lt.s32.totalorder %s22, 0
        %s191 = scalar_select %p190, %s22, 0
        %s192 = scalar_lea.vmem %s2, %s191
        %p193 = pneg %p102
        %p194 = pneg %p99
        %p195 = pneg %p130
        %p196 = pneg %p127
        %s197 = sand.u32 %s117, 1
        %s198 = scalar_lea.sflag [#allocation3], %s197
        %s199 = sand.u32 %s117, 1
        %s200 = smul.addr %s199, 256
        %s201 = scalar_lea.vmem [#allocation2], %s200
        %p202 = scmp.lt.s32.totalorder %s21, 1
        %s203 = scalar_select %p202, %s21, 1
        %s204 = smul.addr %s203, 36
        %s205 = smul.addr %s204, 4
        %s206 = scalar_lea.vmem %s0, %s205
        %p207 = scmp.lt.s32.totalorder %s22, 0
        %s208 = scalar_select %p207, %s22, 0
        %s209 = smul.addr %s208, 4
        %s210 = scalar_lea.vmem %s1, %s209
        %p211 = scmp.lt.s32.totalorder %s22, 0
        %s212 = scalar_select %p211, %s22, 0
        %s213 = scalar_lea.vmem %s2, %s212
        %v215 = vld [vmem:[%s206] sm:$0xf]
        %v216 = vld [vmem:[%s206 + $0x4] sm:$0xf]
        %v217 = vld [vmem:[%s206 + $0x8] sm:$0xf]
        %v218 = vld [vmem:[%s206 + $0xc] sm:$0xf]
        %v219 = vld [vmem:[%s206 + $0x10] sm:$0xf]
        %v220 = vld [vmem:[%s206 + $0x14] sm:$0xf]
        %v221 = vld [vmem:[%s206 + $0x18] sm:$0xf]
        %v222 = vld [vmem:[%s206 + $0x1c] sm:$0xf]
        %v223 = vld [vmem:[%s206 + $0x20] sm:$0xf]
        %v224 = vld [vmem:[%s206 + $0x24] sm:$0xf]
        %v225 = vld [vmem:[%s206 + $0x28] sm:$0xf]
        %v226 = vld [vmem:[%s206 + $0x2c] sm:$0xf]
        %v227 = vld [vmem:[%s206 + $0x30] sm:$0xf]
        %v228 = vld [vmem:[%s206 + $0x34] sm:$0xf]
        %v229 = vld [vmem:[%s206 + $0x38] sm:$0xf]
        %v230 = vld [vmem:[%s206 + $0x3c] sm:$0xf]
        %v231 = vld [vmem:[%s206 + $0x40] sm:$0xf]
        %v232 = vld [vmem:[%s206 + $0x44] sm:$0xf]
        %v233 = vld [vmem:[%s206 + $0x48] sm:$0xf]
        %v234 = vld [vmem:[%s206 + $0x4c] sm:$0xf]
        %v235 = vld [vmem:[%s206 + $0x50] sm:$0xf]
        %v236 = vld [vmem:[%s206 + $0x54] sm:$0xf]
        %v237 = vld [vmem:[%s206 + $0x58] sm:$0xf]
        %v238 = vld [vmem:[%s206 + $0x5c] sm:$0xf]
        %v239 = vld [vmem:[%s206 + $0x60] sm:$0xf]
        %v240 = vld [vmem:[%s206 + $0x64] sm:$0xf]
        %v241 = vld [vmem:[%s206 + $0x68] sm:$0xf]
        %v242 = vld [vmem:[%s206 + $0x6c] sm:$0xf]
        %v243 = vld [vmem:[%s206 + $0x70] sm:$0xf]
        %v244 = vld [vmem:[%s206 + $0x74] sm:$0xf]
        %v245 = vld [vmem:[%s206 + $0x78] sm:$0xf]
        %v246 = vld [vmem:[%s206 + $0x7c] sm:$0xf]
        %v247 = vld [vmem:[%s210] sm:$0xf]
        %v248 = vld [vmem:[%s210 + $0x4] sm:$0x1]
        %v249 = vld [vmem:[%s206 + $0x80] sm:$0xf]
        %v250 = vld [vmem:[%s206 + $0x84] sm:$0xf]
        %s251 = scalar_lea.vmem %s210, 8
        %v252 = vld [vmem:[%s251] sm:$0xf]
        %v253 = vld [vmem:[%s251 + $0x4] sm:$0x1]
        %v286 = vunpack.c.l.b16 %v217
        %v287 = vunpack.c.l.b16 %v218
        %v288 = vunpack.c.l.b16 %v219
        %v289 = vunpack.c.l.b16 %v220
        %v290 = vunpack.c.l.b16 %v221
        %v291 = vunpack.c.l.b16 %v222
        %v292 = vunpack.c.l.b16 %v223
        %v293 = vunpack.c.l.b16 %v224
        %v294 = vunpack.c.l.b16 %v225
        %v295 = vunpack.c.l.b16 %v226
        %v296 = vunpack.c.l.b16 %v227
        %v297 = vunpack.c.l.b16 %v228
        %v298 = vunpack.c.l.b16 %v229
        %v299 = vunpack.c.l.b16 %v230
        %v300 = vunpack.c.l.b16 %v231
        %v301 = vunpack.c.l.b16 %v232
        %v302 = vunpack.c.l.b16 %v233
        %v303 = vunpack.c.l.b16 %v234
        %v304 = vunpack.c.l.b16 %v235
        %v305 = vunpack.c.l.b16 %v236
        %v306 = vunpack.c.l.b16 %v237
        %v307 = vunpack.c.l.b16 %v238
        %v308 = vunpack.c.l.b16 %v239
        %v309 = vunpack.c.l.b16 %v240
        %v310 = vunpack.c.l.b16 %v241
        %v311 = vunpack.c.l.b16 %v242
        %v312 = vunpack.c.l.b16 %v243
        %v313 = vunpack.c.l.b16 %v244
        %v314 = vunpack.c.l.b16 %v245
        %v315 = vunpack.c.l.b16 %v246
        %v316 = vunpack.c.l.b16 %v249
        %v317 = vunpack.c.l.b16 %v250
        %v318 = vpack.c.b16 %v287, %v286
        %v319 = vpack.c.b16 %v289, %v288
        %v320 = vpack.c.b16 %v291, %v290
        %v321 = vpack.c.b16 %v293, %v292
        %v322 = vpack.c.b16 %v295, %v294
        %v323 = vpack.c.b16 %v297, %v296
        %v324 = vpack.c.b16 %v299, %v298
        %v325 = vpack.c.b16 %v301, %v300
        %v326 = vpack.c.b16 %v303, %v302
        %v327 = vpack.c.b16 %v305, %v304
        %v328 = vpack.c.b16 %v307, %v306
        %v329 = vpack.c.b16 %v309, %v308
        %v330 = vpack.c.b16 %v311, %v310
        %v331 = vpack.c.b16 %v313, %v312
        %v332 = vpack.c.b16 %v315, %v314
        %v333 = vpack.c.b16 %v317, %v316
        %v336 = vunpack.c.l.b16 %v252
        %v337 = vunpack.c.l.b16 %v253
        %v338 = vpack.c.b16 %v337, %v336
        %vm339 = vcmask 72704
        %v341 = vsel %vm339, %v318, 0
        %v344 = vsel %vm339, %v319, 0
        %v347 = vsel %vm339, %v320, 0
        %v350 = vsel %vm339, %v321, 0
        %v353 = vsel %vm339, %v322, 0
        %v356 = vsel %vm339, %v323, 0
        %v359 = vsel %vm339, %v324, 0
        %v362 = vsel %vm339, %v325, 0
        %v365 = vsel %vm339, %v326, 0
        %v368 = vsel %vm339, %v327, 0
        %v371 = vsel %vm339, %v328, 0
        %v374 = vsel %vm339, %v329, 0
        %v377 = vsel %vm339, %v330, 0
        %v380 = vsel %vm339, %v331, 0
        %v383 = vsel %vm339, %v332, 0
        %v386 = vsel %vm339, %v333, 0
        %vm388 = vcmask 1043456
        %vm389 = vcmask 1044480
        %v390 = vsel %vm388, 4294967295, 65535
        %v391 = vsel %vm389, %v390, 0
        %v393 = vand.u32 %v338, %v391
        %395 = vmatprep.subr.bf16.mxu0 0
        %396 = vmatpush1.bf16.msra.mxu0 0
        %397 = vmatprep.subr.bf16.mxu0 0
        %398 = vmatpush1.bf16.msra.mxu0 0
        %399 = vmatprep.subr.bf16.mxu0 0
        %400 = vmatpush1.bf16.msra.mxu0 0
        %401 = vmatprep.subr.bf16.mxu0 0
        %402 = vmatpush1.bf16.msra.mxu0 0
        %403 = vmatprep.subr.bf16.mxu0 0
        %404 = vmatpush1.bf16.msra.mxu0 0
        %405 = vmatprep.subr.bf16.mxu0 0
        %406 = vmatpush1.bf16.msra.mxu0 0
        %407 = vmatprep.subr.bf16.mxu0 0
        %408 = vmatpush1.bf16.msra.mxu0 0
        %409 = vmatprep.subr.bf16.mxu0 0
        %410 = vmatpush1.bf16.msra.mxu0 %v393
        %411 = vmatprep.subr.bf16.mxu0 0
        %412 = vmatpush2.bf16.msra.mxu0 0
        %413 = vmatprep.subr.bf16.mxu0 0
        %414 = vmatpush2.bf16.msra.mxu0 0
        %415 = vmatprep.subr.bf16.mxu0 0
        %416 = vmatpush2.bf16.msra.mxu0 0
        %417 = vmatprep.subr.bf16.mxu0 0
        %418 = vmatpush2.bf16.msra.mxu0 0
        %419 = vmatprep.subr.bf16.mxu0 0
        %420 = vmatpush2.bf16.msra.mxu0 0
        %421 = vmatprep.subr.bf16.mxu0 0
        %422 = vmatpush2.bf16.msra.mxu0 0
        %423 = vmatprep.subr.bf16.mxu0 0
        %424 = vmatpush2.bf16.msra.mxu0 0
        %425 = vmatprep.subr.bf16.mxu0 0
        %426 = vmatpush2.bf16.msra.mxu0 0
        %427 = vmatprep.mubr.bf16.mxu0 0
        %428 = vmatmul.mubr.bf16.gmra.mxu0 %v341
        %v429 = vpop.f32.mrf.mxu0
        %v430 = vadd.f32 0.0, %v429
        %v431 = vpop.f32.mrf.mxu0
        %v432 = vpop.f32.mrf.mxu0
        %v433 = vadd.f32 0.0, %v432
        %v434 = vpop.f32.mrf.mxu0
        %435 = vmatprep.mubr.bf16.mxu0 0
        %436 = vmatmul.mubr.bf16.gmra.mxu0 %v344
        %v437 = vpop.f32.mrf.mxu0
        %v438 = vadd.f32 0.0, %v437
        %v439 = vpop.f32.mrf.mxu0
        %v440 = vpop.f32.mrf.mxu0
        %v441 = vadd.f32 0.0, %v440
        %v442 = vpop.f32.mrf.mxu0
        %443 = vmatprep.mubr.bf16.mxu0 0
        %444 = vmatmul.mubr.bf16.gmra.mxu0 %v347
        %v445 = vpop.f32.mrf.mxu0
        %v446 = vadd.f32 0.0, %v445
        %v447 = vpop.f32.mrf.mxu0
        %v448 = vpop.f32.mrf.mxu0
        %v449 = vadd.f32 0.0, %v448
        %v450 = vpop.f32.mrf.mxu0
        %451 = vmatprep.mubr.bf16.mxu0 0
        %452 = vmatmul.mubr.bf16.gmra.mxu0 %v350
        %v453 = vpop.f32.mrf.mxu0
        %v454 = vadd.f32 0.0, %v453
        %v455 = vpop.f32.mrf.mxu0
        %v456 = vpop.f32.mrf.mxu0
        %v457 = vadd.f32 0.0, %v456
        %v458 = vpop.f32.mrf.mxu0
        %459 = vmatprep.mubr.bf16.mxu0 0
        %460 = vmatmul.mubr.bf16.gmra.mxu0 %v353
        %v461 = vpop.f32.mrf.mxu0
        %v462 = vadd.f32 0.0, %v461
        %v463 = vpop.f32.mrf.mxu0
        %v464 = vpop.f32.mrf.mxu0
        %v465 = vadd.f32 0.0, %v464
        %v466 = vpop.f32.mrf.mxu0
        %467 = vmatprep.mubr.bf16.mxu0 0
        %468 = vmatmul.mubr.bf16.gmra.mxu0 %v356
        %v469 = vpop.f32.mrf.mxu0
        %v470 = vadd.f32 0.0, %v469
        %v471 = vpop.f32.mrf.mxu0
        %v472 = vpop.f32.mrf.mxu0
        %v473 = vadd.f32 0.0, %v472
        %v474 = vpop.f32.mrf.mxu0
        %475 = vmatprep.mubr.bf16.mxu0 0
        %476 = vmatmul.mubr.bf16.gmra.mxu0 %v359
        %v477 = vpop.f32.mrf.mxu0
        %v478 = vadd.f32 0.0, %v477
        %v479 = vpop.f32.mrf.mxu0
        %v480 = vpop.f32.mrf.mxu0
        %v481 = vadd.f32 0.0, %v480
        %v482 = vpop.f32.mrf.mxu0
        %483 = vmatprep.mubr.bf16.mxu0 0
        %484 = vmatmul.mubr.bf16.gmra.mxu0 %v362
        %v485 = vpop.f32.mrf.mxu0
        %v486 = vadd.f32 0.0, %v485
        %v487 = vpop.f32.mrf.mxu0
        %v488 = vpop.f32.mrf.mxu0
        %v489 = vadd.f32 0.0, %v488
        %v490 = vpop.f32.mrf.mxu0
        %491 = vmatprep.mubr.bf16.mxu0 0
        %492 = vmatmul.mubr.bf16.gmra.mxu0 %v365
        %v493 = vpop.f32.mrf.mxu0
        %v494 = vadd.f32 0.0, %v493
        %v495 = vpop.f32.mrf.mxu0
        %v496 = vpop.f32.mrf.mxu0
        %v497 = vadd.f32 0.0, %v496
        %v498 = vpop.f32.mrf.mxu0
        %499 = vmatprep.mubr.bf16.mxu0 0
        %500 = vmatmul.mubr.bf16.gmra.mxu0 %v368
        %v501 = vpop.f32.mrf.mxu0
        %v502 = vadd.f32 0.0, %v501
        %v503 = vpop.f32.mrf.mxu0
        %v504 = vpop.f32.mrf.mxu0
        %v505 = vadd.f32 0.0, %v504
        %v506 = vpop.f32.mrf.mxu0
        %507 = vmatprep.mubr.bf16.mxu0 0
        %508 = vmatmul.mubr.bf16.gmra.mxu0 %v371
        %v509 = vpop.f32.mrf.mxu0
        %v510 = vadd.f32 0.0, %v509
        %v511 = vpop.f32.mrf.mxu0
        %v512 = vpop.f32.mrf.mxu0
        %v513 = vadd.f32 0.0, %v512
        %v514 = vpop.f32.mrf.mxu0
        %515 = vmatprep.mubr.bf16.mxu0 0
        %516 = vmatmul.mubr.bf16.gmra.mxu0 %v374
        %v517 = vpop.f32.mrf.mxu0
        %v518 = vadd.f32 0.0, %v517
        %v519 = vpop.f32.mrf.mxu0
        %v520 = vpop.f32.mrf.mxu0
        %v521 = vadd.f32 0.0, %v520
        %v522 = vpop.f32.mrf.mxu0
        %523 = vmatprep.mubr.bf16.mxu0 0
        %524 = vmatmul.mubr.bf16.gmra.mxu0 %v377
        %v525 = vpop.f32.mrf.mxu0
        %v526 = vadd.f32 0.0, %v525
        %v527 = vpop.f32.mrf.mxu0
        %v528 = vpop.f32.mrf.mxu0
        %v529 = vadd.f32 0.0, %v528
        %v530 = vpop.f32.mrf.mxu0
        %531 = vmatprep.mubr.bf16.mxu0 0
        %532 = vmatmul.mubr.bf16.gmra.mxu0 %v380
        %v533 = vpop.f32.mrf.mxu0
        %v534 = vadd.f32 0.0, %v533
        %v535 = vpop.f32.mrf.mxu0
        %v536 = vpop.f32.mrf.mxu0
        %v537 = vadd.f32 0.0, %v536
        %v538 = vpop.f32.mrf.mxu0
        %539 = vmatprep.mubr.bf16.mxu0 0
        %540 = vmatmul.mubr.bf16.gmra.mxu0 %v383
        %v541 = vpop.f32.mrf.mxu0
        %v542 = vadd.f32 0.0, %v541
        %v543 = vpop.f32.mrf.mxu0
        %v544 = vpop.f32.mrf.mxu0
        %v545 = vadd.f32 0.0, %v544
        %v546 = vpop.f32.mrf.mxu0
        %547 = vmatprep.mubr.bf16.mxu0 0
        %548 = vmatmul.mubr.bf16.gmra.mxu0 %v386
        %v549 = vpop.f32.mrf.mxu0
        %v550 = vadd.f32 0.0, %v549
        %v551 = vpop.f32.mrf.mxu0
        %v552 = vpop.f32.mrf.mxu0
        %v553 = vadd.f32 0.0, %v552
        %v554 = vpop.f32.mrf.mxu0
        %555 = vdwg.mxu0
        %v558 = vunpack.c.l.b16 %v215
        %v559 = vunpack.c.l.b16 %v216
        %v560 = vpack.c.b16 %v559, %v558
        %v563 = vunpack.c.l.b16 %v247
        %v564 = vunpack.c.l.b16 %v248
        %v565 = vpack.c.b16 %v564, %v563
        %v567 = vsel %vm339, %v560, 0
        %v570 = vand.u32 %v565, %v391
        %572 = vmatprep.subr.bf16.mxu0 0
        %573 = vmatpush1.bf16.msra.mxu0 0
        %574 = vmatprep.subr.bf16.mxu0 0
        %575 = vmatpush1.bf16.msra.mxu0 0
        %576 = vmatprep.subr.bf16.mxu0 0
        %577 = vmatpush1.bf16.msra.mxu0 0
        %578 = vmatprep.subr.bf16.mxu0 0
        %579 = vmatpush1.bf16.msra.mxu0 0
        %580 = vmatprep.subr.bf16.mxu0 0
        %581 = vmatpush1.bf16.msra.mxu0 0
        %582 = vmatprep.subr.bf16.mxu0 0
        %583 = vmatpush1.bf16.msra.mxu0 0
        %584 = vmatprep.subr.bf16.mxu0 0
        %585 = vmatpush1.bf16.msra.mxu0 0
        %586 = vmatprep.subr.bf16.mxu0 0
        %587 = vmatpush1.bf16.msra.mxu0 %v570
        %588 = vmatprep.subr.bf16.mxu0 0
        %589 = vmatpush2.bf16.msra.mxu0 0
        %590 = vmatprep.subr.bf16.mxu0 0
        %591 = vmatpush2.bf16.msra.mxu0 0
        %592 = vmatprep.subr.bf16.mxu0 0
        %593 = vmatpush2.bf16.msra.mxu0 0
        %594 = vmatprep.subr.bf16.mxu0 0
        %595 = vmatpush2.bf16.msra.mxu0 0
        %596 = vmatprep.subr.bf16.mxu0 0
        %597 = vmatpush2.bf16.msra.mxu0 0
        %598 = vmatprep.subr.bf16.mxu0 0
        %599 = vmatpush2.bf16.msra.mxu0 0
        %600 = vmatprep.subr.bf16.mxu0 0
        %601 = vmatpush2.bf16.msra.mxu0 0
        %602 = vmatprep.subr.bf16.mxu0 0
        %603 = vmatpush2.bf16.msra.mxu0 0
        %604 = vmatprep.mubr.bf16.mxu0 0
        %605 = vmatmul.mubr.bf16.gmra.mxu0 %v567
        %v606 = vpop.f32.mrf.mxu0
        %v607 = vadd.f32 %v430, %v606
        %v608 = vpop.f32.mrf.mxu0
        %v609 = vpop.f32.mrf.mxu0
        %v610 = vadd.f32 %v433, %v609
        %v611 = vpop.f32.mrf.mxu0
        %612 = vmatprep.mubr.bf16.mxu0 0
        %613 = vmatmul.mubr.bf16.gmra.mxu0 %v341
        %v614 = vpop.f32.mrf.mxu0
        %v615 = vadd.f32 %v438, %v614
        %v616 = vpop.f32.mrf.mxu0
        %v617 = vpop.f32.mrf.mxu0
        %v618 = vadd.f32 %v441, %v617
        %v619 = vpop.f32.mrf.mxu0
        %620 = vmatprep.mubr.bf16.mxu0 0
        %621 = vmatmul.mubr.bf16.gmra.mxu0 %v344
        %v622 = vpop.f32.mrf.mxu0
        %v623 = vadd.f32 %v446, %v622
        %v624 = vpop.f32.mrf.mxu0
        %v625 = vpop.f32.mrf.mxu0
        %v626 = vadd.f32 %v449, %v625
        %v627 = vpop.f32.mrf.mxu0
        %628 = vmatprep.mubr.bf16.mxu0 0
        %629 = vmatmul.mubr.bf16.gmra.mxu0 %v347
        %v630 = vpop.f32.mrf.mxu0
        %v631 = vadd.f32 %v454, %v630
        %v632 = vpop.f32.mrf.mxu0
        %v633 = vpop.f32.mrf.mxu0
        %v634 = vadd.f32 %v457, %v633
        %v635 = vpop.f32.mrf.mxu0
        %636 = vmatprep.mubr.bf16.mxu0 0
        %637 = vmatmul.mubr.bf16.gmra.mxu0 %v350
        %v638 = vpop.f32.mrf.mxu0
        %v639 = vadd.f32 %v462, %v638
        %v640 = vpop.f32.mrf.mxu0
        %v641 = vpop.f32.mrf.mxu0
        %v642 = vadd.f32 %v465, %v641
        %v643 = vpop.f32.mrf.mxu0
        %644 = vmatprep.mubr.bf16.mxu0 0
        %645 = vmatmul.mubr.bf16.gmra.mxu0 %v353
        %v646 = vpop.f32.mrf.mxu0
        %v647 = vadd.f32 %v470, %v646
        %v648 = vpop.f32.mrf.mxu0
        %v649 = vpop.f32.mrf.mxu0
        %v650 = vadd.f32 %v473, %v649
        %v651 = vpop.f32.mrf.mxu0
        %652 = vmatprep.mubr.bf16.mxu0 0
        %653 = vmatmul.mubr.bf16.gmra.mxu0 %v356
        %v654 = vpop.f32.mrf.mxu0
        %v655 = vadd.f32 %v478, %v654
        %v656 = vpop.f32.mrf.mxu0
        %v657 = vpop.f32.mrf.mxu0
        %v658 = vadd.f32 %v481, %v657
        %v659 = vpop.f32.mrf.mxu0
        %660 = vmatprep.mubr.bf16.mxu0 0
        %661 = vmatmul.mubr.bf16.gmra.mxu0 %v359
        %v662 = vpop.f32.mrf.mxu0
        %v663 = vadd.f32 %v486, %v662
        %v664 = vpop.f32.mrf.mxu0
        %v665 = vpop.f32.mrf.mxu0
        %v666 = vadd.f32 %v489, %v665
        %v667 = vpop.f32.mrf.mxu0
        %668 = vmatprep.mubr.bf16.mxu0 0
        %669 = vmatmul.mubr.bf16.gmra.mxu0 %v362
        %v670 = vpop.f32.mrf.mxu0
        %v671 = vadd.f32 %v494, %v670
        %v672 = vpop.f32.mrf.mxu0
        %v673 = vpop.f32.mrf.mxu0
        %v674 = vadd.f32 %v497, %v673
        %v675 = vpop.f32.mrf.mxu0
        %676 = vmatprep.mubr.bf16.mxu0 0
        %677 = vmatmul.mubr.bf16.gmra.mxu0 %v365
        %v678 = vpop.f32.mrf.mxu0
        %v679 = vadd.f32 %v502, %v678
        %v680 = vpop.f32.mrf.mxu0
        %v681 = vpop.f32.mrf.mxu0
        %v682 = vadd.f32 %v505, %v681
        %v683 = vpop.f32.mrf.mxu0
        %684 = vmatprep.mubr.bf16.mxu0 0
        %685 = vmatmul.mubr.bf16.gmra.mxu0 %v368
        %v686 = vpop.f32.mrf.mxu0
        %v687 = vadd.f32 %v510, %v686
        %v688 = vpop.f32.mrf.mxu0
        %v689 = vpop.f32.mrf.mxu0
        %v690 = vadd.f32 %v513, %v689
        %v691 = vpop.f32.mrf.mxu0
        %692 = vmatprep.mubr.bf16.mxu0 0
        %693 = vmatmul.mubr.bf16.gmra.mxu0 %v371
        %v694 = vpop.f32.mrf.mxu0
        %v695 = vadd.f32 %v518, %v694
        %v696 = vpop.f32.mrf.mxu0
        %v697 = vpop.f32.mrf.mxu0
        %v698 = vadd.f32 %v521, %v697
        %v699 = vpop.f32.mrf.mxu0
        %700 = vmatprep.mubr.bf16.mxu0 0
        %701 = vmatmul.mubr.bf16.gmra.mxu0 %v374
        %v702 = vpop.f32.mrf.mxu0
        %v703 = vadd.f32 %v526, %v702
        %v704 = vpop.f32.mrf.mxu0
        %v705 = vpop.f32.mrf.mxu0
        %v706 = vadd.f32 %v529, %v705
        %v707 = vpop.f32.mrf.mxu0
        %708 = vmatprep.mubr.bf16.mxu0 0
        %709 = vmatmul.mubr.bf16.gmra.mxu0 %v377
        %v710 = vpop.f32.mrf.mxu0
        %v711 = vadd.f32 %v534, %v710
        %v712 = vpop.f32.mrf.mxu0
        %v713 = vpop.f32.mrf.mxu0
        %v714 = vadd.f32 %v537, %v713
        %v715 = vpop.f32.mrf.mxu0
        %716 = vmatprep.mubr.bf16.mxu0 0
        %717 = vmatmul.mubr.bf16.gmra.mxu0 %v380
        %v718 = vpop.f32.mrf.mxu0
        %v719 = vadd.f32 %v542, %v718
        %v720 = vpop.f32.mrf.mxu0
        %v721 = vpop.f32.mrf.mxu0
        %v722 = vadd.f32 %v545, %v721
        %v723 = vpop.f32.mrf.mxu0
        %724 = vmatprep.mubr.bf16.mxu0 0
        %725 = vmatmul.mubr.bf16.gmra.mxu0 %v383
        %v726 = vpop.f32.mrf.mxu0
        %v727 = vadd.f32 %v550, %v726
        %v728 = vpop.f32.mrf.mxu0
        %v729 = vpop.f32.mrf.mxu0
        %v730 = vadd.f32 %v553, %v729
        %v731 = vpop.f32.mrf.mxu0
        %732 = vdwg.mxu0
        %v733 = vld [vmem:[%s206 + $0x10] sm:$0xf]
        %v734 = vld [vmem:[%s206 + $0x14] sm:$0xf]
        %v735 = vld [vmem:[%s206 + $0x18] sm:$0xf]
        %v736 = vld [vmem:[%s206 + $0x1c] sm:$0xf]
        %v737 = vld [vmem:[%s206 + $0x20] sm:$0xf]
        %v738 = vld [vmem:[%s206 + $0x24] sm:$0xf]
        %v739 = vld [vmem:[%s206 + $0x28] sm:$0xf]
        %v740 = vld [vmem:[%s206 + $0x2c] sm:$0xf]
        %v741 = vld [vmem:[%s206 + $0x30] sm:$0xf]
        %v742 = vld [vmem:[%s206 + $0x34] sm:$0xf]
        %v743 = vld [vmem:[%s206 + $0x38] sm:$0xf]
        %v744 = vld [vmem:[%s206 + $0x3c] sm:$0xf]
        %v745 = vld [vmem:[%s206 + $0x40] sm:$0xf]
        %v746 = vld [vmem:[%s206 + $0x44] sm:$0xf]
        %v747 = vld [vmem:[%s206 + $0x48] sm:$0xf]
        %v748 = vld [vmem:[%s206 + $0x4c] sm:$0xf]
        %v749 = vld [vmem:[%s206 + $0x50] sm:$0xf]
        %v750 = vld [vmem:[%s206 + $0x54] sm:$0xf]
        %v751 = vld [vmem:[%s206 + $0x58] sm:$0xf]
        %v752 = vld [vmem:[%s206 + $0x5c] sm:$0xf]
        %v753 = vld [vmem:[%s206 + $0x60] sm:$0xf]
        %v754 = vld [vmem:[%s206 + $0x64] sm:$0xf]
        %v755 = vld [vmem:[%s206 + $0x68] sm:$0xf]
        %v756 = vld [vmem:[%s206 + $0x6c] sm:$0xf]
        %v757 = vld [vmem:[%s206 + $0x70] sm:$0xf]
        %v758 = vld [vmem:[%s206 + $0x74] sm:$0xf]
        %v759 = vld [vmem:[%s206 + $0x78] sm:$0xf]
        %v760 = vld [vmem:[%s206 + $0x7c] sm:$0xf]
        %v761 = vld [vmem:[%s206 + $0x80] sm:$0xf]
        %v762 = vld [vmem:[%s206 + $0x84] sm:$0xf]
        %v763 = vld [vmem:[%s206 + $0x88] sm:$0xf]
        %v764 = vld [vmem:[%s206 + $0x8c] sm:$0xf]
        %s765 = scalar_lea.vmem %s210, 16
        %v766 = vld [vmem:[%s765] sm:$0xf]
        %v767 = vld [vmem:[%s765 + $0x4] sm:$0x1]
        %v800 = vunpack.c.l.b16 %v733
        %v801 = vunpack.c.l.b16 %v734
        %v802 = vunpack.c.l.b16 %v735
        %v803 = vunpack.c.l.b16 %v736
        %v804 = vunpack.c.l.b16 %v737
        %v805 = vunpack.c.l.b16 %v738
        %v806 = vunpack.c.l.b16 %v739
        %v807 = vunpack.c.l.b16 %v740
        %v808 = vunpack.c.l.b16 %v741
        %v809 = vunpack.c.l.b16 %v742
        %v810 = vunpack.c.l.b16 %v743
        %v811 = vunpack.c.l.b16 %v744
        %v812 = vunpack.c.l.b16 %v745
        %v813 = vunpack.c.l.b16 %v746
        %v814 = vunpack.c.l.b16 %v747
        %v815 = vunpack.c.l.b16 %v748
        %v816 = vunpack.c.l.b16 %v749
        %v817 = vunpack.c.l.b16 %v750
        %v818 = vunpack.c.l.b16 %v751
        %v819 = vunpack.c.l.b16 %v752
        %v820 = vunpack.c.l.b16 %v753
        %v821 = vunpack.c.l.b16 %v754
        %v822 = vunpack.c.l.b16 %v755
        %v823 = vunpack.c.l.b16 %v756
        %v824 = vunpack.c.l.b16 %v757
        %v825 = vunpack.c.l.b16 %v758
        %v826 = vunpack.c.l.b16 %v759
        %v827 = vunpack.c.l.b16 %v760
        %v828 = vunpack.c.l.b16 %v761
        %v829 = vunpack.c.l.b16 %v762
        %v830 = vunpack.c.l.b16 %v763
        %v831 = vunpack.c.l.b16 %v764
        %v832 = vpack.c.b16 %v801, %v800
        %v833 = vpack.c.b16 %v803, %v802
        %v834 = vpack.c.b16 %v805, %v804
        %v835 = vpack.c.b16 %v807, %v806
        %v836 = vpack.c.b16 %v809, %v808
        %v837 = vpack.c.b16 %v811, %v810
        %v838 = vpack.c.b16 %v813, %v812
        %v839 = vpack.c.b16 %v815, %v814
        %v840 = vpack.c.b16 %v817, %v816
        %v841 = vpack.c.b16 %v819, %v818
        %v842 = vpack.c.b16 %v821, %v820
        %v843 = vpack.c.b16 %v823, %v822
        %v844 = vpack.c.b16 %v825, %v824
        %v845 = vpack.c.b16 %v827, %v826
        %v846 = vpack.c.b16 %v829, %v828
        %v847 = vpack.c.b16 %v831, %v830
        %v850 = vunpack.c.l.b16 %v766
        %v851 = vunpack.c.l.b16 %v767
        %v852 = vpack.c.b16 %v851, %v850
        %v854 = vsel %vm339, %v832, 0
        %v857 = vsel %vm339, %v833, 0
        %v860 = vsel %vm339, %v834, 0
        %v863 = vsel %vm339, %v835, 0
        %v866 = vsel %vm339, %v836, 0
        %v869 = vsel %vm339, %v837, 0
        %v872 = vsel %vm339, %v838, 0
        %v875 = vsel %vm339, %v839, 0
        %v878 = vsel %vm339, %v840, 0
        %v881 = vsel %vm339, %v841, 0
        %v884 = vsel %vm339, %v842, 0
        %v887 = vsel %vm339, %v843, 0
        %v890 = vsel %vm339, %v844, 0
        %v893 = vsel %vm339, %v845, 0
        %v896 = vsel %vm339, %v846, 0
        %v899 = vsel %vm339, %v847, 0
        %v902 = vand.u32 %v852, %v391
        %904 = vmatprep.subr.bf16.mxu0 0
        %905 = vmatpush1.bf16.msra.mxu0 0
        %906 = vmatprep.subr.bf16.mxu0 0
        %907 = vmatpush1.bf16.msra.mxu0 0
        %908 = vmatprep.subr.bf16.mxu0 0
        %909 = vmatpush1.bf16.msra.mxu0 0
        %910 = vmatprep.subr.bf16.mxu0 0
        %911 = vmatpush1.bf16.msra.mxu0 0
        %912 = vmatprep.subr.bf16.mxu0 0
        %913 = vmatpush1.bf16.msra.mxu0 0
        %914 = vmatprep.subr.bf16.mxu0 0
        %915 = vmatpush1.bf16.msra.mxu0 0
        %916 = vmatprep.subr.bf16.mxu0 0
        %917 = vmatpush1.bf16.msra.mxu0 0
        %918 = vmatprep.subr.bf16.mxu0 0
        %919 = vmatpush1.bf16.msra.mxu0 %v902
        %920 = vmatprep.subr.bf16.mxu0 0
        %921 = vmatpush2.bf16.msra.mxu0 0
        %922 = vmatprep.subr.bf16.mxu0 0
        %923 = vmatpush2.bf16.msra.mxu0 0
        %924 = vmatprep.subr.bf16.mxu0 0
        %925 = vmatpush2.bf16.msra.mxu0 0
        %926 = vmatprep.subr.bf16.mxu0 0
        %927 = vmatpush2.bf16.msra.mxu0 0
        %928 = vmatprep.subr.bf16.mxu0 0
        %929 = vmatpush2.bf16.msra.mxu0 0
        %930 = vmatprep.subr.bf16.mxu0 0
        %931 = vmatpush2.bf16.msra.mxu0 0
        %932 = vmatprep.subr.bf16.mxu0 0
        %933 = vmatpush2.bf16.msra.mxu0 0
        %934 = vmatprep.subr.bf16.mxu0 0
        %935 = vmatpush2.bf16.msra.mxu0 0
        %936 = vmatprep.mubr.bf16.mxu0 0
        %937 = vmatmul.mubr.bf16.gmra.mxu0 %v854
        %v938 = vpop.f32.mrf.mxu0
        %v939 = vadd.f32 0.0, %v938
        %v940 = vpop.f32.mrf.mxu0
        %v941 = vpop.f32.mrf.mxu0
        %v942 = vadd.f32 0.0, %v941
        %v943 = vpop.f32.mrf.mxu0
        %944 = vmatprep.mubr.bf16.mxu0 0
        %945 = vmatmul.mubr.bf16.gmra.mxu0 %v857
        %v946 = vpop.f32.mrf.mxu0
        %v947 = vadd.f32 0.0, %v946
        %v948 = vpop.f32.mrf.mxu0
        %v949 = vpop.f32.mrf.mxu0
        %v950 = vadd.f32 0.0, %v949
        %v951 = vpop.f32.mrf.mxu0
        %952 = vmatprep.mubr.bf16.mxu0 0
        %953 = vmatmul.mubr.bf16.gmra.mxu0 %v860
        %v954 = vpop.f32.mrf.mxu0
        %v955 = vadd.f32 0.0, %v954
        %v956 = vpop.f32.mrf.mxu0
        %v957 = vpop.f32.mrf.mxu0
        %v958 = vadd.f32 0.0, %v957
        %v959 = vpop.f32.mrf.mxu0
        %960 = vmatprep.mubr.bf16.mxu0 0
        %961 = vmatmul.mubr.bf16.gmra.mxu0 %v863
        %v962 = vpop.f32.mrf.mxu0
        %v963 = vadd.f32 0.0, %v962
        %v964 = vpop.f32.mrf.mxu0
        %v965 = vpop.f32.mrf.mxu0
        %v966 = vadd.f32 0.0, %v965
        %v967 = vpop.f32.mrf.mxu0
        %968 = vmatprep.mubr.bf16.mxu0 0
        %969 = vmatmul.mubr.bf16.gmra.mxu0 %v866
        %v970 = vpop.f32.mrf.mxu0
        %v971 = vadd.f32 0.0, %v970
        %v972 = vpop.f32.mrf.mxu0
        %v973 = vpop.f32.mrf.mxu0
        %v974 = vadd.f32 0.0, %v973
        %v975 = vpop.f32.mrf.mxu0
        %976 = vmatprep.mubr.bf16.mxu0 0
        %977 = vmatmul.mubr.bf16.gmra.mxu0 %v869
        %v978 = vpop.f32.mrf.mxu0
        %v979 = vadd.f32 0.0, %v978
        %v980 = vpop.f32.mrf.mxu0
        %v981 = vpop.f32.mrf.mxu0
        %v982 = vadd.f32 0.0, %v981
        %v983 = vpop.f32.mrf.mxu0
        %984 = vmatprep.mubr.bf16.mxu0 0
        %985 = vmatmul.mubr.bf16.gmra.mxu0 %v872
        %v986 = vpop.f32.mrf.mxu0
        %v987 = vadd.f32 0.0, %v986
        %v988 = vpop.f32.mrf.mxu0
        %v989 = vpop.f32.mrf.mxu0
        %v990 = vadd.f32 0.0, %v989
        %v991 = vpop.f32.mrf.mxu0
        %992 = vmatprep.mubr.bf16.mxu0 0
        %993 = vmatmul.mubr.bf16.gmra.mxu0 %v875
        %v994 = vpop.f32.mrf.mxu0
        %v995 = vadd.f32 0.0, %v994
        %v996 = vpop.f32.mrf.mxu0
        %v997 = vpop.f32.mrf.mxu0
        %v998 = vadd.f32 0.0, %v997
        %v999 = vpop.f32.mrf.mxu0
        %1000 = vmatprep.mubr.bf16.mxu0 0
        %1001 = vmatmul.mubr.bf16.gmra.mxu0 %v878
        %v1002 = vpop.f32.mrf.mxu0
        %v1003 = vadd.f32 0.0, %v1002
        %v1004 = vpop.f32.mrf.mxu0
        %v1005 = vpop.f32.mrf.mxu0
        %v1006 = vadd.f32 0.0, %v1005
        %v1007 = vpop.f32.mrf.mxu0
        %1008 = vmatprep.mubr.bf16.mxu0 0
        %1009 = vmatmul.mubr.bf16.gmra.mxu0 %v881
        %v1010 = vpop.f32.mrf.mxu0
        %v1011 = vadd.f32 0.0, %v1010
        %v1012 = vpop.f32.mrf.mxu0
        %v1013 = vpop.f32.mrf.mxu0
        %v1014 = vadd.f32 0.0, %v1013
        %v1015 = vpop.f32.mrf.mxu0
        %1016 = vmatprep.mubr.bf16.mxu0 0
        %1017 = vmatmul.mubr.bf16.gmra.mxu0 %v884
        %v1018 = vpop.f32.mrf.mxu0
        %v1019 = vadd.f32 0.0, %v1018
        %v1020 = vpop.f32.mrf.mxu0
        %v1021 = vpop.f32.mrf.mxu0
        %v1022 = vadd.f32 0.0, %v1021
        %v1023 = vpop.f32.mrf.mxu0
        %1024 = vmatprep.mubr.bf16.mxu0 0
        %1025 = vmatmul.mubr.bf16.gmra.mxu0 %v887
        %v1026 = vpop.f32.mrf.mxu0
        %v1027 = vadd.f32 0.0, %v1026
        %v1028 = vpop.f32.mrf.mxu0
        %v1029 = vpop.f32.mrf.mxu0
        %v1030 = vadd.f32 0.0, %v1029
        %v1031 = vpop.f32.mrf.mxu0
        %1032 = vmatprep.mubr.bf16.mxu0 0
        %1033 = vmatmul.mubr.bf16.gmra.mxu0 %v890
        %v1034 = vpop.f32.mrf.mxu0
        %v1035 = vadd.f32 0.0, %v1034
        %v1036 = vpop.f32.mrf.mxu0
        %v1037 = vpop.f32.mrf.mxu0
        %v1038 = vadd.f32 0.0, %v1037
        %v1039 = vpop.f32.mrf.mxu0
        %1040 = vmatprep.mubr.bf16.mxu0 0
        %1041 = vmatmul.mubr.bf16.gmra.mxu0 %v893
        %v1042 = vpop.f32.mrf.mxu0
        %v1043 = vadd.f32 0.0, %v1042
        %v1044 = vpop.f32.mrf.mxu0
        %v1045 = vpop.f32.mrf.mxu0
        %v1046 = vadd.f32 0.0, %v1045
        %v1047 = vpop.f32.mrf.mxu0
        %1048 = vmatprep.mubr.bf16.mxu0 0
        %1049 = vmatmul.mubr.bf16.gmra.mxu0 %v896
        %v1050 = vpop.f32.mrf.mxu0
        %v1051 = vadd.f32 0.0, %v1050
        %v1052 = vpop.f32.mrf.mxu0
        %v1053 = vpop.f32.mrf.mxu0
        %v1054 = vadd.f32 0.0, %v1053
        %v1055 = vpop.f32.mrf.mxu0
        %1056 = vmatprep.mubr.bf16.mxu0 0
        %1057 = vmatmul.mubr.bf16.gmra.mxu0 %v899
        %v1058 = vpop.f32.mrf.mxu0
        %v1059 = vadd.f32 0.0, %v1058
        %v1060 = vpop.f32.mrf.mxu0
        %v1061 = vpop.f32.mrf.mxu0
        %v1062 = vadd.f32 0.0, %v1061
        %v1063 = vpop.f32.mrf.mxu0
        %1064 = vdwg.mxu0
        %v1065 = vadd.f32 %v607, %v939
        %v1066 = vadd.f32 %v610, %v942
        %v1067 = vadd.f32 %v615, %v947
        %v1068 = vadd.f32 %v618, %v950
        %v1069 = vadd.f32 %v623, %v955
        %v1070 = vadd.f32 %v626, %v958
        %v1071 = vadd.f32 %v631, %v963
        %v1072 = vadd.f32 %v634, %v966
        %v1073 = vadd.f32 %v639, %v971
        %v1074 = vadd.f32 %v642, %v974
        %v1075 = vadd.f32 %v647, %v979
        %v1076 = vadd.f32 %v650, %v982
        %v1077 = vadd.f32 %v655, %v987
        %v1078 = vadd.f32 %v658, %v990
        %v1079 = vadd.f32 %v663, %v995
        %v1080 = vadd.f32 %v666, %v998
        %v1081 = vadd.f32 %v671, %v1003
        %v1082 = vadd.f32 %v674, %v1006
        %v1083 = vadd.f32 %v679, %v1011
        %v1084 = vadd.f32 %v682, %v1014
        %v1085 = vadd.f32 %v687, %v1019
        %v1086 = vadd.f32 %v690, %v1022
        %v1087 = vadd.f32 %v695, %v1027
        %v1088 = vadd.f32 %v698, %v1030
        %v1089 = vadd.f32 %v703, %v1035
        %v1090 = vadd.f32 %v706, %v1038
        %v1091 = vadd.f32 %v711, %v1043
        %v1092 = vadd.f32 %v714, %v1046
        %v1093 = vadd.f32 %v719, %v1051
        %v1094 = vadd.f32 %v722, %v1054
        %v1095 = vadd.f32 %v727, %v1059
        %v1096 = vadd.f32 %v730, %v1062
        %v1097 = vld [vmem:[%s213] sm:$0x1]
        %v1099 = vlaneseq
        %v1100 = vshrl.u32 %v1099, 7
        %v1101 = vsub.s32 0, %v1100
        %v1102 = vrot.slane %v1097, %v1101
        %v1104 = vadd.f32 %v1065, %v1102
        %v1105 = vadd.f32 %v1066, %v1102
        %v1106 = vadd.f32 %v1067, %v1102
        %v1107 = vadd.f32 %v1068, %v1102
        %v1108 = vadd.f32 %v1069, %v1102
        %v1109 = vadd.f32 %v1070, %v1102
        %v1110 = vadd.f32 %v1071, %v1102
        %v1111 = vadd.f32 %v1072, %v1102
        %v1112 = vadd.f32 %v1073, %v1102
        %v1113 = vadd.f32 %v1074, %v1102
        %v1114 = vadd.f32 %v1075, %v1102
        %v1115 = vadd.f32 %v1076, %v1102
        %v1116 = vadd.f32 %v1077, %v1102
        %v1117 = vadd.f32 %v1078, %v1102
        %v1118 = vadd.f32 %v1079, %v1102
        %v1119 = vadd.f32 %v1080, %v1102
        %v1120 = vadd.f32 %v1081, %v1102
        %v1121 = vadd.f32 %v1082, %v1102
        %v1122 = vadd.f32 %v1083, %v1102
        %v1123 = vadd.f32 %v1084, %v1102
        %v1124 = vadd.f32 %v1085, %v1102
        %v1125 = vadd.f32 %v1086, %v1102
        %v1126 = vadd.f32 %v1087, %v1102
        %v1127 = vadd.f32 %v1088, %v1102
        %v1128 = vadd.f32 %v1089, %v1102
        %v1129 = vadd.f32 %v1090, %v1102
        %v1130 = vadd.f32 %v1091, %v1102
        %v1131 = vadd.f32 %v1092, %v1102
        %v1132 = vadd.f32 %v1093, %v1102
        %v1133 = vadd.f32 %v1094, %v1102
        %v1134 = vadd.f32 %v1095, %v1102
        %v1135 = vadd.f32 %v1096, %v1102
        %v1136 = vmax.f32 %v1104, 0.0
        %v1137 = vmax.f32 %v1105, 0.0
        %v1138 = vmax.f32 %v1106, 0.0
        %v1139 = vmax.f32 %v1107, 0.0
        %v1140 = vmax.f32 %v1108, 0.0
        %v1141 = vmax.f32 %v1109, 0.0
        %v1142 = vmax.f32 %v1110, 0.0
        %v1143 = vmax.f32 %v1111, 0.0
        %v1144 = vmax.f32 %v1112, 0.0
        %v1145 = vmax.f32 %v1113, 0.0
        %v1146 = vmax.f32 %v1114, 0.0
        %v1147 = vmax.f32 %v1115, 0.0
        %v1148 = vmax.f32 %v1116, 0.0
        %v1149 = vmax.f32 %v1117, 0.0
        %v1150 = vmax.f32 %v1118, 0.0
        %v1151 = vmax.f32 %v1119, 0.0
        %v1152 = vmax.f32 %v1120, 0.0
        %v1153 = vmax.f32 %v1121, 0.0
        %v1154 = vmax.f32 %v1122, 0.0
        %v1155 = vmax.f32 %v1123, 0.0
        %v1156 = vmax.f32 %v1124, 0.0
        %v1157 = vmax.f32 %v1125, 0.0
        %v1158 = vmax.f32 %v1126, 0.0
        %v1159 = vmax.f32 %v1127, 0.0
        %v1160 = vmax.f32 %v1128, 0.0
        %v1161 = vmax.f32 %v1129, 0.0
        %v1162 = vmax.f32 %v1130, 0.0
        %v1163 = vmax.f32 %v1131, 0.0
        %v1164 = vmax.f32 %v1132, 0.0
        %v1165 = vmax.f32 %v1133, 0.0
        %v1166 = vmax.f32 %v1134, 0.0
        %v1167 = vmax.f32 %v1135, 0.0
        %1168 = vst [vmem:[%s201] sm:$0xff] %v1136
        %1169 = vst [vmem:[%s201 + $0x8] sm:$0xff] %v1137
        %1170 = vst [vmem:[%s201 + $0x10] sm:$0xff] %v1138
        %1171 = vst [vmem:[%s201 + $0x18] sm:$0xff] %v1139
        %1172 = vst [vmem:[%s201 + $0x20] sm:$0xff] %v1140
        %1173 = vst [vmem:[%s201 + $0x28] sm:$0xff] %v1141
        %1174 = vst [vmem:[%s201 + $0x30] sm:$0xff] %v1142
        %1175 = vst [vmem:[%s201 + $0x38] sm:$0xff] %v1143
        %1176 = vst [vmem:[%s201 + $0x40] sm:$0xff] %v1144
        %1177 = vst [vmem:[%s201 + $0x48] sm:$0xff] %v1145
        %1178 = vst [vmem:[%s201 + $0x50] sm:$0xff] %v1146
        %1179 = vst [vmem:[%s201 + $0x58] sm:$0xff] %v1147
        %1180 = vst [vmem:[%s201 + $0x60] sm:$0xff] %v1148
        %1181 = vst [vmem:[%s201 + $0x68] sm:$0xff] %v1149
        %1182 = vst [vmem:[%s201 + $0x70] sm:$0xff] %v1150
        %1183 = vst [vmem:[%s201 + $0x78] sm:$0xff] %v1151
        %1184 = vst [vmem:[%s201 + $0x80] sm:$0xff] %v1152
        %1185 = vst [vmem:[%s201 + $0x88] sm:$0xff] %v1153
        %1186 = vst [vmem:[%s201 + $0x90] sm:$0xff] %v1154
        %1187 = vst [vmem:[%s201 + $0x98] sm:$0xff] %v1155
        %1188 = vst [vmem:[%s201 + $0xa0] sm:$0xff] %v1156
        %1189 = vst [vmem:[%s201 + $0xa8] sm:$0xff] %v1157
        %1190 = vst [vmem:[%s201 + $0xb0] sm:$0xff] %v1158
        %1191 = vst [vmem:[%s201 + $0xb8] sm:$0xff] %v1159
        %1192 = vst [vmem:[%s201 + $0xc0] sm:$0xff] %v1160
        %1193 = vst [vmem:[%s201 + $0xc8] sm:$0xff] %v1161
        %1194 = vst [vmem:[%s201 + $0xd0] sm:$0xff] %v1162
        %1195 = vst [vmem:[%s201 + $0xd8] sm:$0xff] %v1163
        %1196 = vst [vmem:[%s201 + $0xe0] sm:$0xff] %v1164
        %1197 = vst [vmem:[%s201 + $0xe8] sm:$0xff] %v1165
        %1198 = vst [vmem:[%s201 + $0xf0] sm:$0xff] %v1166
        %1199 = vst [vmem:[%s201 + $0xf8] sm:$0xff] %v1167
        %s1200 = sand.u32 %s117, 1
        %s1201 = scalar_lea.sflag [#allocation3], %s1200
        %s1202 = sand.u32 %s117, 1
        %s1203 = smul.addr %s1202, 256
        %s1204 = scalar_lea.vmem [#allocation2], %s1203
        // Predicated region
        $region33: #{conv3x3_relu.1} parent=31 // pred_check
          %p1205 = pneg %p127
        $region34: #{conv3x3_relu.1} parent=31 // pred_check_branch
          %1207 = sbr.rel (%p1205) target = $region36
        $region35: #{conv3x3_relu.1} parent=31 // pred_region
          %s1209 = ssub.s32 4096, 4096
          %1210 = vsyncadd %s1201, %s1209
          %s1211 = smul.addr %s21, 32
          %s1212 = sadd.s32 %s22, %s1211
          %s1213 = smul.addr %s1212, 128
          %s1214 = scalar_lea.hbm %s3, %s1213
          %s1215 = sshll.u32 %s1204, 4
          %s1216 = int_to_ptr.vmem [resolvable:$true] %s1215
          %1221 = dma.vmem_to_hbm [thread:$0]  %s1216, 4096, %s1214, %s1201, 128, 128, 8
        $region36: #{conv3x3_relu.1} parent=31 // pred_fallthru
          _
      $region32: #{conv3x3_relu.1} parent=5 // pred_fallthru
        _
      %p1222 = scmp.le.s32.totalorder 2, %s12
      // Predicated region
      $region37: #{conv3x3_relu.1} parent=5 // pred_check
        %p1223 = pneg %p1222
      $region38: #{conv3x3_relu.1} parent=5 // pred_check_branch
        %1225 = sbr.rel (%p1223) target = $region40
      $region39: #{conv3x3_relu.1} parent=5 // pred_region
        %s1226 = ssub.s32 %s12, 2
        // Predicated region
        $region41: #{conv3x3_relu.1} parent=39 // pred_check
          %p1227 = pneg %p133
        $region42: #{conv3x3_relu.1} parent=39 // pred_check_branch
          %1229 = sbr.rel (%p1227) target = $region44
        $region43: #{conv3x3_relu.1} parent=39 // pred_region
          %s1230 = sand.u32 %s118, 1
          %s1231 = scalar_lea.sflag [#allocation3], %s1230
          %s1232 = sand.u32 %s118, 1
          %s1233 = smul.addr %s1232, 256
          %s1234 = scalar_lea.vmem [#allocation2], %s1233
          %1235 = dma.done %s1231, 4096
        $region44: #{conv3x3_relu.1} parent=39 // pred_fallthru
          _
      $region40: #{conv3x3_relu.1} parent=5 // pred_fallthru
        _
    $region6: #{conv3x3_relu.1} parent=1 // loop_footer
      %s16 = sadd.s32 1, %s12
    $region7: #{conv3x3_relu.1} parent=1 // loop_footer_branch
      %11 = sbr.rel target = $region3
    $region8: #{conv3x3_relu.1} parent=1 // loop_exit
      _
    %1236 = vsyncpa [#allocation3], 1
    %s1237 = scalar_lea.sflag [#allocation3], 1
    %1238 = vsyncpa %s1237, 1

</llo_original>
